<compile_context>
chip_gen: v7x
topology: tpu7x:2x2x1
jax: 0.10.0
libtpu: 0.0.40
codegen_flags: <defaults>
</compile_context>

<pallas_src>
import jax
import jax.numpy as jnp
from jax.experimental import pallas as pl
from jax.experimental.pallas import tpu as pltpu


def _round_up(x, m):
    return (x + m - 1) // m * m


def _is_v7x():
    try:
        return "v7" in jax.devices()[0].device_kind.lower()
    except Exception:
        return False


def _mlp_kernel(s_ref, a_ref, w1s_ref, w1a_ref, b1_ref, w2_ref, b2_ref,
                w3_ref, b3_ref, o_ref):
    # fc1: state @ W1[:repr_len] + action * W1[repr_len] + b1, then ReLU.
    # Cast of the state tile to the matmul operand dtype happens here (hidden
    # under the tile DMA); action path stays f32 on the VPU.
    h1 = jnp.dot(s_ref[...].astype(w1s_ref.dtype), w1s_ref[...],
                 preferred_element_type=jnp.float32)
    h1 = h1 + a_ref[...] * w1a_ref[...]               # (bm,1)*(1,hid), f32
    h1 = jnp.maximum(h1 + b1_ref[...], 0.0)           # bias/ReLU in f32
    # fc2
    h2 = jnp.dot(h1.astype(w2_ref.dtype), w2_ref[...],
                 preferred_element_type=jnp.float32)
    h2 = jnp.maximum(h2 + b2_ref[...], 0.0)
    # fc3 -- real (hid, obs_dim) weight, compact (bm, obs_dim) output store
    out = jnp.dot(h2.astype(w3_ref.dtype), w3_ref[...],
                  preferred_element_type=jnp.float32)
    o_ref[...] = (out + b3_ref[...]).astype(o_ref.dtype)


def state_predictor_forward(state, action, params, *, bm=1024,
                            param_dtype=jnp.bfloat16):
    """Pallas forward for StatePredictor.

    state:  (B, repr_len) float32
    action: (B, 1)        float32
    params: w1 (repr_len+1, 128), b1 (1,128), w2 (128,128), b2 (1,128),
            w3 (128, obs_dim),    b3 (1, obs_dim)  -- float32, (in, out)
    param_dtype: matmul operand dtype (bf16 default; f32 accumulation always).
    """
    B, repr_len = state.shape
    w1, b1 = params["w1"], params["b1"]
    w2, b2 = params["w2"], params["b2"]
    w3, b3 = params["w3"], params["b3"]
    hid = w1.shape[1]
    obs_dim = w3.shape[1]

    # ---- batch tiling (ragged batches handled by Pallas partial last block;
    #      safe because the computation is strictly row-wise) ----
    bm = max(8, _round_up(bm, 8))
    bm = min(bm, _round_up(B, 8))
    if _is_v7x() and B > 8:
        # v7x: 2 TensorCores per chip -> keep >=2 steps on the parallel axis.
        bm = min(bm, _round_up(-(-B // 2), 8))
    grid = (pl.cdiv(B, bm),)

    # ---- parameter operands (one-time, tiny) ----
    w1s = w1[:repr_len, :].astype(param_dtype)               # state rows of W1
    w1a = w1[repr_len:repr_len + 1, :].astype(jnp.float32)   # action row of W1
    w2c = w2.astype(param_dtype)
    w3c = w3.astype(param_dtype)
    b1f = b1.astype(jnp.float32)
    b2f = b2.astype(jnp.float32)
    b3f = b3.astype(jnp.float32)

    full = lambda shape: pl.BlockSpec(shape, lambda i: (0, 0))

    isz = jnp.dtype(param_dtype).itemsize
    cost = pl.CostEstimate(
        flops=2 * B * (repr_len * hid + hid * hid + hid * obs_dim)
        + B * (4 * hid + 2 * obs_dim),
        transcendentals=0,
        bytes_accessed=(B * (repr_len + 1) * 4                     # state+action (f32)
                        + (repr_len * hid + hid * hid + hid * obs_dim) * isz
                        + (3 * hid + obs_dim) * 4                  # w1a + biases (f32)
                        + B * obs_dim * 4),                        # output (f32)
    )

    out = pl.pallas_call(
        _mlp_kernel,
        out_shape=jax.ShapeDtypeStruct((B, obs_dim), jnp.float32),
        grid_spec=pltpu.PrefetchScalarGridSpec(
            num_scalar_prefetch=0,
            grid=grid,
            in_specs=[
                pl.BlockSpec((bm, repr_len), lambda i: (i, 0)),  # state tile (f32)
                pl.BlockSpec((bm, 1), lambda i: (i, 0)),         # action tile (f32)
                full((repr_len, hid)),                           # w1 state rows
                full((1, hid)),                                  # w1 action row (f32)
                full((1, hid)),                                  # b1
                full((hid, hid)),                                # w2
                full((1, hid)),                                  # b2
                full((hid, obs_dim)),                            # w3 (unpadded)
                full((1, obs_dim)),                              # b3 (unpadded)
            ],
            out_specs=pl.BlockSpec((bm, obs_dim), lambda i: (i, 0)),
        ),
        compiler_params=pltpu.CompilerParams(
            dimension_semantics=("parallel",),
        ),
        cost_estimate=cost,
    )(state, action, w1s, w1a, b1f, w2c, b2f, w3c, b3f)

    return out


def init_params(key, repr_len, obs_dim, hidden=128):
    """Deterministic nn.Linear-style init (uniform +/- 1/sqrt(fan_in))."""
    in_dim = repr_len + 1
    k = jax.random.split(key, 6)

    def lin(kw, kb, fan_in, fan_out):
        bound = 1.0 / jnp.sqrt(fan_in)
        w = jax.random.uniform(kw, (fan_in, fan_out), jnp.float32, -bound, bound)
        b = jax.random.uniform(kb, (1, fan_out), jnp.float32, -bound, bound)
        return w, b

    w1, b1 = lin(k[0], k[1], in_dim, hidden)
    w2, b2 = lin(k[2], k[3], hidden, hidden)
    w3, b3 = lin(k[4], k[5], hidden, obs_dim)
    return {"w1": w1, "b1": b1, "w2": w2, "b2": b2, "w3": w3, "b3": b3}


def _ref_forward(state, action, p):
    x = jnp.concatenate([state, action], axis=-1)
    h = jnp.maximum(x @ p["w1"] + p["b1"], 0.0)
    h = jnp.maximum(h @ p["w2"] + p["b2"], 0.0)
    return h @ p["w3"] + p["b3"]


if __name__ == "__main__":
    # Small shapes consistent with the module: representation_length = 16
    # (obs_shape[1]), scalar action appended, hidden = 128, output dim = 16.
    repr_len, obs_dim = 16, 16
    key = jax.random.PRNGKey(0)
    k_params, k_data = jax.random.split(key)
    params = init_params(k_params, repr_len, obs_dim)

    checks = [
        (8, jnp.float32, 1e-4, 1e-4),    # tiny batch
        (50, jnp.float32, 1e-4, 1e-4),   # ragged batch (partial-block path)
        (64, jnp.bfloat16, 5e-2, 5e-2),  # bf16 operands, f32 accumulation
    ]
    for B, dt, atol, rtol in checks:
        ks, ka = jax.random.split(jax.random.fold_in(k_data, B))
        state = jax.random.normal(ks, (B, repr_len), jnp.float32)
        action = jax.random.normal(ka, (B, 1), jnp.float32)
        out = jax.block_until_ready(
            state_predictor_forward(state, action, params, param_dtype=dt))
        ref = _ref_forward(state, action, params)
        assert out.shape == (B, obs_dim), (out.shape, B, obs_dim)
        assert jnp.allclose(out, ref, atol=atol, rtol=rtol), (B, str(dt))

    print("KERNEL_OK")
</pallas_src>

<mosaic_0001>
module attributes {stable_mosaic.version = 11 : i64} {
  func.func @_mlp_kernel(%arg0: i32, %arg1: memref<8x16xf32, #tpu.memory_space<vmem>>, %arg2: memref<8x1xf32, #tpu.memory_space<vmem>>, %arg3: memref<16x128xf32, #tpu.memory_space<vmem>>, %arg4: memref<1x128xf32, #tpu.memory_space<vmem>>, %arg5: memref<1x128xf32, #tpu.memory_space<vmem>>, %arg6: memref<128x128xf32, #tpu.memory_space<vmem>>, %arg7: memref<1x128xf32, #tpu.memory_space<vmem>>, %arg8: memref<128x16xf32, #tpu.memory_space<vmem>>, %arg9: memref<1x16xf32, #tpu.memory_space<vmem>>, %arg10: memref<8x16xf32, #tpu.memory_space<vmem>>) attributes {dimension_semantics = [#tpu.dimension_semantics<parallel>], iteration_bounds = array<i64: 1>, scalar_prefetch = 0 : i64, scratch_operands = 0 : i64, tpu.core_type = #tpu.core_type<tc>, window_params = [{transform_indices = @transform_0, window_bounds = array<i64: 8, 16>}, {transform_indices = @transform_1, window_bounds = array<i64: 8, 1>}, {pipeline_mode = #tpu.pipeline_mode<synchronous>, transform_indices = @transform_2, window_bounds = array<i64: 16, 128>}, {pipeline_mode = #tpu.pipeline_mode<synchronous>, transform_indices = @transform_3, window_bounds = array<i64: 1, 128>}, {pipeline_mode = #tpu.pipeline_mode<synchronous>, transform_indices = @transform_4, window_bounds = array<i64: 1, 128>}, {pipeline_mode = #tpu.pipeline_mode<synchronous>, transform_indices = @transform_5, window_bounds = array<i64: 128, 128>}, {pipeline_mode = #tpu.pipeline_mode<synchronous>, transform_indices = @transform_6, window_bounds = array<i64: 1, 128>}, {pipeline_mode = #tpu.pipeline_mode<synchronous>, transform_indices = @transform_7, window_bounds = array<i64: 128, 16>}, {pipeline_mode = #tpu.pipeline_mode<synchronous>, transform_indices = @transform_8, window_bounds = array<i64: 1, 16>}, {transform_indices = @transform_9, window_bounds = array<i64: 8, 16>}]} {
    %c0 = arith.constant 0 : index
    %c0_0 = arith.constant 0 : index
    %0 = vector.load %arg1[%c0, %c0_0] : memref<8x16xf32, #tpu.memory_space<vmem>>, vector<8x16xf32>
    %c0_1 = arith.constant 0 : index
    %c0_2 = arith.constant 0 : index
    %1 = vector.load %arg3[%c0_1, %c0_2] : memref<16x128xf32, #tpu.memory_space<vmem>>, vector<16x128xf32>
    %cst = arith.constant dense<0.000000e+00> : vector<8x128xf32>
    %2 = tpu.matmul %0, %1, %cst {dimension_numbers = #tpu.dot_dimension_numbers<[1], [0], [0], [1], [0, 0, 1, 1], [], []>} : vector<8x16xf32>, vector<16x128xf32>, vector<8x128xf32> -> vector<8x128xf32>
    %c0_3 = arith.constant 0 : index
    %c0_4 = arith.constant 0 : index
    %3 = vector.load %arg2[%c0_3, %c0_4] : memref<8x1xf32, #tpu.memory_space<vmem>>, vector<8x1xf32>
    %c0_5 = arith.constant 0 : index
    %c0_6 = arith.constant 0 : index
    %4 = vector.load %arg4[%c0_5, %c0_6] : memref<1x128xf32, #tpu.memory_space<vmem>>, vector<1x128xf32>
    %5 = vector.broadcast %3 : vector<8x1xf32> to vector<8x128xf32>
    %6 = vector.broadcast %4 : vector<1x128xf32> to vector<8x128xf32>
    %7 = arith.mulf %5, %6 : vector<8x128xf32>
    %8 = arith.addf %2, %7 : vector<8x128xf32>
    %c0_7 = arith.constant 0 : index
    %c0_8 = arith.constant 0 : index
    %9 = vector.load %arg5[%c0_7, %c0_8] : memref<1x128xf32, #tpu.memory_space<vmem>>, vector<1x128xf32>
    %10 = vector.broadcast %9 : vector<1x128xf32> to vector<8x128xf32>
    %11 = arith.addf %8, %10 : vector<8x128xf32>
    %cst_9 = arith.constant 0.000000e+00 : f32
    %12 = vector.broadcast %cst_9 : f32 to vector<8x128xf32>
    %13 = arith.maximumf %11, %12 : vector<8x128xf32>
    %c0_10 = arith.constant 0 : index
    %c0_11 = arith.constant 0 : index
    %14 = vector.load %arg6[%c0_10, %c0_11] : memref<128x128xf32, #tpu.memory_space<vmem>>, vector<128x128xf32>
    %cst_12 = arith.constant dense<0.000000e+00> : vector<8x128xf32>
    %15 = tpu.matmul %13, %14, %cst_12 {dimension_numbers = #tpu.dot_dimension_numbers<[1], [0], [0], [1], [0, 0, 1, 1], [], []>} : vector<8x128xf32>, vector<128x128xf32>, vector<8x128xf32> -> vector<8x128xf32>
    %c0_13 = arith.constant 0 : index
    %c0_14 = arith.constant 0 : index
    %16 = vector.load %arg7[%c0_13, %c0_14] : memref<1x128xf32, #tpu.memory_space<vmem>>, vector<1x128xf32>
    %17 = vector.broadcast %16 : vector<1x128xf32> to vector<8x128xf32>
    %18 = arith.addf %15, %17 : vector<8x128xf32>
    %cst_15 = arith.constant 0.000000e+00 : f32
    %19 = vector.broadcast %cst_15 : f32 to vector<8x128xf32>
    %20 = arith.maximumf %18, %19 : vector<8x128xf32>
    %c0_16 = arith.constant 0 : index
    %c0_17 = arith.constant 0 : index
    %21 = vector.load %arg8[%c0_16, %c0_17] : memref<128x16xf32, #tpu.memory_space<vmem>>, vector<128x16xf32>
    %cst_18 = arith.constant dense<0.000000e+00> : vector<8x16xf32>
    %22 = tpu.matmul %20, %21, %cst_18 {dimension_numbers = #tpu.dot_dimension_numbers<[1], [0], [0], [1], [0, 0, 1, 1], [], []>} : vector<8x128xf32>, vector<128x16xf32>, vector<8x16xf32> -> vector<8x16xf32>
    %c0_19 = arith.constant 0 : index
    %c0_20 = arith.constant 0 : index
    %23 = vector.load %arg9[%c0_19, %c0_20] : memref<1x16xf32, #tpu.memory_space<vmem>>, vector<1x16xf32>
    %24 = vector.broadcast %23 : vector<1x16xf32> to vector<8x16xf32>
    %25 = arith.addf %22, %24 : vector<8x16xf32>
    %c0_21 = arith.constant 0 : index
    %c0_22 = arith.constant 0 : index
    %26 = vector.load %arg10[%c0_21, %c0_22] : memref<8x16xf32, #tpu.memory_space<vmem>>, vector<8x16xf32>
    tpu.vector_store %arg10[%c0_21, %c0_22], %25 {strides = array<i32>} : memref<8x16xf32, #tpu.memory_space<vmem>>, vector<8x16xf32>,
    return
  }
  func.func @transform_0(%arg0: i32) -> (i32, i32) {
    %c0_i32 = arith.constant 0 : i32
    %c0_i32_0 = arith.constant 0 : i32
    return %arg0, %c0_i32 : i32, i32
  }
  func.func @transform_1(%arg0: i32) -> (i32, i32) {
    %c0_i32 = arith.constant 0 : i32
    %c0_i32_0 = arith.constant 0 : i32
    return %arg0, %c0_i32 : i32, i32
  }
  func.func @transform_2(%arg0: i32) -> (i32, i32) {
    %c0_i32 = arith.constant 0 : i32
    %c0_i32_0 = arith.constant 0 : i32
    %c0_i32_1 = arith.constant 0 : i32
    return %c0_i32, %c0_i32_0 : i32, i32
  }
  func.func @transform_3(%arg0: i32) -> (i32, i32) {
    %c0_i32 = arith.constant 0 : i32
    %c0_i32_0 = arith.constant 0 : i32
    %c0_i32_1 = arith.constant 0 : i32
    return %c0_i32, %c0_i32_0 : i32, i32
  }
  func.func @transform_4(%arg0: i32) -> (i32, i32) {
    %c0_i32 = arith.constant 0 : i32
    %c0_i32_0 = arith.constant 0 : i32
    %c0_i32_1 = arith.constant 0 : i32
    return %c0_i32, %c0_i32_0 : i32, i32
  }
  func.func @transform_5(%arg0: i32) -> (i32, i32) {
    %c0_i32 = arith.constant 0 : i32
    %c0_i32_0 = arith.constant 0 : i32
    %c0_i32_1 = arith.constant 0 : i32
    return %c0_i32, %c0_i32_0 : i32, i32
  }
  func.func @transform_6(%arg0: i32) -> (i32, i32) {
    %c0_i32 = arith.constant 0 : i32
    %c0_i32_0 = arith.constant 0 : i32
    %c0_i32_1 = arith.constant 0 : i32
    return %c0_i32, %c0_i32_0 : i32, i32
  }
  func.func @transform_7(%arg0: i32) -> (i32, i32) {
    %c0_i32 = arith.constant 0 : i32
    %c0_i32_0 = arith.constant 0 : i32
    %c0_i32_1 = arith.constant 0 : i32
    return %c0_i32, %c0_i32_0 : i32, i32
  }
  func.func @transform_8(%arg0: i32) -> (i32, i32) {
    %c0_i32 = arith.constant 0 : i32
    %c0_i32_0 = arith.constant 0 : i32
    %c0_i32_1 = arith.constant 0 : i32
    return %c0_i32, %c0_i32_0 : i32, i32
  }
  func.func @transform_9(%arg0: i32) -> (i32, i32) {
    %c0_i32 = arith.constant 0 : i32
    %c0_i32_0 = arith.constant 0 : i32
    return %arg0, %c0_i32 : i32, i32
  }
}

</mosaic_0001>

<llo_original>
// kernel: tpu_custom_call.1
$region0: #{tpu_custom_call.1}
  #allocation0 [shape = 'u32[]', space=smem, size = 0x4, offset = 0x4, fixed_abs, tag = 'smem constant byte address 0x4 - core index']
  #allocation1 [shape = 'u32[144,128]{1,0:T(1,128)}', space=vmem, size = 0x12000, scoped, tag = 'internal scratch']
  %s0 = inlined_call_operand.vmem [shape: f32[8,16], index: 0, kind: input, shape index: {}]
  %s1 = inlined_call_operand.vmem [shape: f32[8,1], index: 1, kind: input, shape index: {}]
  %s2 = inlined_call_operand.vmem [shape: f32[16,128], index: 2, kind: input, shape index: {}]
  %s3 = inlined_call_operand.vmem [shape: f32[1,128], index: 3, kind: input, shape index: {}]
  %s4 = inlined_call_operand.vmem [shape: f32[1,128], index: 4, kind: input, shape index: {}]
  %s5 = inlined_call_operand.vmem [shape: f32[128,128], index: 5, kind: input, shape index: {}]
  %s6 = inlined_call_operand.vmem [shape: f32[1,128], index: 6, kind: input, shape index: {}]
  %s7 = inlined_call_operand.vmem [shape: f32[128,16], index: 7, kind: input, shape index: {}]
  %s8 = inlined_call_operand.vmem [shape: f32[1,16], index: 8, kind: input, shape index: {}]
  %s9 = inlined_call_operand.hbm [shape: f32[8,16], index: 9, kind: output, shape index: {}]
  %s10 = sld [smem:[#allocation0]]
  $region46: #{tpu_custom_call.1} parent=0
    _
  %s12 = ssub.s32 1, %s10
  %s13 = scalar_select 0, %s12, %s10
  $region1: #{tpu_custom_call.1} parent=0
    #allocation2 [shape = 'u8[4096]{0}', space=vmem, size = 0x1000, scoped, tag = 'output window, operand 0, single buffered']
    #allocation3 [shape = 's32[1]{0}', space=sflag, size = 0x4, scoped, tag = 'scoped memory for tpu_custom_call.1']
    %14 = vsyncpa [#allocation3], 0
    // Predicated region
    $region2: #{tpu_custom_call.1} parent=1 // pred_check
      _
    $region3: #{tpu_custom_call.1} parent=1 // pred_check_branch
      %16 = sbr.rel (0) target = $region5
    $region4: #{tpu_custom_call.1} parent=1 // pred_region
      _
    $region5: #{tpu_custom_call.1} parent=1 // pred_fallthru
      _
    // Predicated region
    $region6: #{tpu_custom_call.1} parent=1 // pred_check
      _
    $region7: #{tpu_custom_call.1} parent=1 // pred_check_branch
      %18 = sbr.rel (0) target = $region9
    $region8: #{tpu_custom_call.1} parent=1 // pred_region
      _
    $region9: #{tpu_custom_call.1} parent=1 // pred_fallthru
      _
    // Predicated region
    $region10: #{tpu_custom_call.1} parent=1 // pred_check
      _
    $region11: #{tpu_custom_call.1} parent=1 // pred_check_branch
      %20 = sbr.rel (0) target = $region13
    $region12: #{tpu_custom_call.1} parent=1 // pred_region
      _
    $region13: #{tpu_custom_call.1} parent=1 // pred_fallthru
      _
    // Predicated region
    $region14: #{tpu_custom_call.1} parent=1 // pred_check
      _
    $region15: #{tpu_custom_call.1} parent=1 // pred_check_branch
      %22 = sbr.rel (0) target = $region17
    $region16: #{tpu_custom_call.1} parent=1 // pred_region
      _
    $region17: #{tpu_custom_call.1} parent=1 // pred_fallthru
      _
    // Predicated region
    $region18: #{tpu_custom_call.1} parent=1 // pred_check
      _
    $region19: #{tpu_custom_call.1} parent=1 // pred_check_branch
      %24 = sbr.rel (0) target = $region21
    $region20: #{tpu_custom_call.1} parent=1 // pred_region
      _
    $region21: #{tpu_custom_call.1} parent=1 // pred_fallthru
      _
    // Predicated region
    $region22: #{tpu_custom_call.1} parent=1 // pred_check
      _
    $region23: #{tpu_custom_call.1} parent=1 // pred_check_branch
      %26 = sbr.rel (0) target = $region25
    $region24: #{tpu_custom_call.1} parent=1 // pred_region
      _
    $region25: #{tpu_custom_call.1} parent=1 // pred_fallthru
      _
    // Predicated region
    $region26: #{tpu_custom_call.1} parent=1 // pred_check
      _
    $region27: #{tpu_custom_call.1} parent=1 // pred_check_branch
      %28 = sbr.rel (0) target = $region29
    $region28: #{tpu_custom_call.1} parent=1 // pred_region
      _
    $region29: #{tpu_custom_call.1} parent=1 // pred_fallthru
      _
    // Predicated region
    $region30: #{tpu_custom_call.1} parent=1 // pred_check
      _
    $region31: #{tpu_custom_call.1} parent=1 // pred_check_branch
      %30 = sbr.rel (0) target = $region33
    $region32: #{tpu_custom_call.1} parent=1 // pred_region
      _
    $region33: #{tpu_custom_call.1} parent=1 // pred_fallthru
      _
    // Predicated region
    $region34: #{tpu_custom_call.1} parent=1 // pred_check
      _
    $region35: #{tpu_custom_call.1} parent=1 // pred_check_branch
      %32 = sbr.rel (0) target = $region37
    $region36: #{tpu_custom_call.1} parent=1 // pred_region
      _
    $region37: #{tpu_custom_call.1} parent=1 // pred_fallthru
      _
    %v33 = vld [vmem:[%s0] sm:$0xff]
    %v34 = vld [vmem:[%s2] sm:$0xff]
    %v35 = vld [vmem:[%s2 + $0x8] sm:$0xff]
    %v36 = vld [vmem:[%s1] sm:$0xff]
    %v37 = vld [vmem:[%s3] sm:$0x1]
    %39 = vset.pattern.permute.xlu0 0
    %40 = vperm.xlu0 %39, %v36
    %v41 = vpop.permute.xlu0 %40
    %v44 = vlaneseq
    %v45 = vshrl.u32 %v44, 7
    %v46 = vsub.s32 0, %v45
    %v47 = vrot.slane %v37, %v46
    %v49 = vmul.f32 %v41, %v47
    %vm50 = vcmask 130048
    %v52 = vsel %vm50, %v33, 0
    %54 = vmatprep.subr.mxu0 0.0
    %55 = vmatpush1.msra.mxu0 %v34
    %56 = vmatprep.subr.mxu0 0.0
    %57 = vmatpush1.msra.mxu0 %v35
    %58 = vmatprep.subr.mxu0 0.0
    %59 = vmatpush1.msra.mxu0 0.0
    %60 = vmatprep.subr.mxu0 0.0
    %61 = vmatpush1.msra.mxu0 0.0
    %62 = vmatprep.subr.mxu0 0.0
    %63 = vmatpush1.msra.mxu0 0.0
    %64 = vmatprep.subr.mxu0 0.0
    %65 = vmatpush1.msra.mxu0 0.0
    %66 = vmatprep.subr.mxu0 0.0
    %67 = vmatpush1.msra.mxu0 0.0
    %68 = vmatprep.subr.mxu0 0.0
    %69 = vmatpush1.msra.mxu0 0.0
    %70 = vmatprep.subr.mxu0 0.0
    %71 = vmatpush1.msra.mxu0 0.0
    %72 = vmatprep.subr.mxu0 0.0
    %73 = vmatpush1.msra.mxu0 0.0
    %74 = vmatprep.subr.mxu0 0.0
    %75 = vmatpush1.msra.mxu0 0.0
    %76 = vmatprep.subr.mxu0 0.0
    %77 = vmatpush1.msra.mxu0 0.0
    %78 = vmatprep.subr.mxu0 0.0
    %79 = vmatpush1.msra.mxu0 0.0
    %80 = vmatprep.subr.mxu0 0.0
    %81 = vmatpush1.msra.mxu0 0.0
    %82 = vmatprep.subr.mxu0 0.0
    %83 = vmatpush1.msra.mxu0 0.0
    %84 = vmatprep.subr.mxu0 0.0
    %85 = vmatpush1.msra.mxu0 0.0
    %86 = vmatprep.subr.mxu0 0.0
    %87 = vmatpush1.msra.mxu0 0.0
    %88 = vmatprep.subr.mxu0 0.0
    %89 = vmatpush1.msra.mxu0 0.0
    %90 = vmatprep.subr.mxu0 0.0
    %91 = vmatpush1.msra.mxu0 0.0
    %92 = vmatprep.subr.mxu0 0.0
    %93 = vmatpush1.msra.mxu0 0.0
    %94 = vmatprep.subr.mxu0 0.0
    %95 = vmatpush1.msra.mxu0 0.0
    %96 = vmatprep.subr.mxu0 0.0
    %97 = vmatpush1.msra.mxu0 0.0
    %98 = vmatprep.subr.mxu0 0.0
    %99 = vmatpush1.msra.mxu0 0.0
    %100 = vmatprep.subr.mxu0 0.0
    %101 = vmatpush1.msra.mxu0 0.0
    %102 = vmatprep.subr.mxu0 0.0
    %103 = vmatpush1.msra.mxu0 0.0
    %104 = vmatprep.subr.mxu0 0.0
    %105 = vmatpush1.msra.mxu0 0.0
    %106 = vmatprep.subr.mxu0 0.0
    %107 = vmatpush1.msra.mxu0 0.0
    %108 = vmatprep.subr.mxu0 0.0
    %109 = vmatpush1.msra.mxu0 0.0
    %110 = vmatprep.subr.mxu0 0.0
    %111 = vmatpush1.msra.mxu0 0.0
    %112 = vmatprep.subr.mxu0 0.0
    %113 = vmatpush1.msra.mxu0 0.0
    %114 = vmatprep.subr.mxu0 0.0
    %115 = vmatpush1.msra.mxu0 0.0
    %116 = vmatprep.subr.mxu0 0.0
    %117 = vmatpush1.msra.mxu0 0.0
    %118 = vmatprep.mubr.f32.mxu0 0.0
    %119 = vmatmul.mubr.f32.gmra.mrb[0].mxu0 %v52
    %v120 = vpop.f32.mrb[0].mxu0
    %v121 = vadd.f32 %v49, %v120
    %v122 = vpop.f32.mrb[0].mxu0
    %123 = vdwg.mxu0
    %v124 = vld [vmem:[%s4] sm:$0x1]
    %v126 = vlaneseq
    %v127 = vshrl.u32 %v126, 7
    %v128 = vsub.s32 0, %v127
    %v129 = vrot.slane %v124, %v128
    %v131 = vadd.f32 %v121, %v129
    %v132 = vmax.f32 %v131, 0.0
    %v133 = vld [vmem:[%s5] sm:$0xff]
    %v134 = vld [vmem:[%s5 + $0x8] sm:$0xff]
    %v135 = vld [vmem:[%s5 + $0x10] sm:$0xff]
    %v136 = vld [vmem:[%s5 + $0x18] sm:$0xff]
    %v137 = vld [vmem:[%s5 + $0x20] sm:$0xff]
    %v138 = vld [vmem:[%s5 + $0x28] sm:$0xff]
    %v139 = vld [vmem:[%s5 + $0x30] sm:$0xff]
    %v140 = vld [vmem:[%s5 + $0x38] sm:$0xff]
    %v141 = vld [vmem:[%s5 + $0x40] sm:$0xff]
    %v142 = vld [vmem:[%s5 + $0x48] sm:$0xff]
    %v143 = vld [vmem:[%s5 + $0x50] sm:$0xff]
    %v144 = vld [vmem:[%s5 + $0x58] sm:$0xff]
    %v145 = vld [vmem:[%s5 + $0x60] sm:$0xff]
    %v146 = vld [vmem:[%s5 + $0x68] sm:$0xff]
    %v147 = vld [vmem:[%s5 + $0x70] sm:$0xff]
    %v148 = vld [vmem:[%s5 + $0x78] sm:$0xff]
    %v149 = vld [vmem:[%s6] sm:$0x1]
    %v151 = vlaneseq
    %v152 = vshrl.u32 %v151, 7
    %v153 = vsub.s32 0, %v152
    %v154 = vrot.slane %v149, %v153
    %156 = vmatprep.subr.mxu0 0.0
    %157 = vmatpush1.msra.mxu0 %v133
    %158 = vmatprep.subr.mxu0 0.0
    %159 = vmatpush1.msra.mxu0 %v134
    %160 = vmatprep.subr.mxu0 0.0
    %161 = vmatpush1.msra.mxu0 %v135
    %162 = vmatprep.subr.mxu0 0.0
    %163 = vmatpush1.msra.mxu0 %v136
    %164 = vmatprep.subr.mxu0 0.0
    %165 = vmatpush1.msra.mxu0 %v137
    %166 = vmatprep.subr.mxu0 0.0
    %167 = vmatpush1.msra.mxu0 %v138
    %168 = vmatprep.subr.mxu0 0.0
    %169 = vmatpush1.msra.mxu0 %v139
    %170 = vmatprep.subr.mxu0 0.0
    %171 = vmatpush1.msra.mxu0 %v140
    %172 = vmatprep.subr.mxu0 0.0
    %173 = vmatpush1.msra.mxu0 %v141
    %174 = vmatprep.subr.mxu0 0.0
    %175 = vmatpush1.msra.mxu0 %v142
    %176 = vmatprep.subr.mxu0 0.0
    %177 = vmatpush1.msra.mxu0 %v143
    %178 = vmatprep.subr.mxu0 0.0
    %179 = vmatpush1.msra.mxu0 %v144
    %180 = vmatprep.subr.mxu0 0.0
    %181 = vmatpush1.msra.mxu0 %v145
    %182 = vmatprep.subr.mxu0 0.0
    %183 = vmatpush1.msra.mxu0 %v146
    %184 = vmatprep.subr.mxu0 0.0
    %185 = vmatpush1.msra.mxu0 %v147
    %186 = vmatprep.subr.mxu0 0.0
    %187 = vmatpush1.msra.mxu0 %v148
    %188 = vmatprep.subr.mxu0 0.0
    %189 = vmatpush1.msra.mxu0 0.0
    %190 = vmatprep.subr.mxu0 0.0
    %191 = vmatpush1.msra.mxu0 0.0
    %192 = vmatprep.subr.mxu0 0.0
    %193 = vmatpush1.msra.mxu0 0.0
    %194 = vmatprep.subr.mxu0 0.0
    %195 = vmatpush1.msra.mxu0 0.0
    %196 = vmatprep.subr.mxu0 0.0
    %197 = vmatpush1.msra.mxu0 0.0
    %198 = vmatprep.subr.mxu0 0.0
    %199 = vmatpush1.msra.mxu0 0.0
    %200 = vmatprep.subr.mxu0 0.0
    %201 = vmatpush1.msra.mxu0 0.0
    %202 = vmatprep.subr.mxu0 0.0
    %203 = vmatpush1.msra.mxu0 0.0
    %204 = vmatprep.subr.mxu0 0.0
    %205 = vmatpush1.msra.mxu0 0.0
    %206 = vmatprep.subr.mxu0 0.0
    %207 = vmatpush1.msra.mxu0 0.0
    %208 = vmatprep.subr.mxu0 0.0
    %209 = vmatpush1.msra.mxu0 0.0
    %210 = vmatprep.subr.mxu0 0.0
    %211 = vmatpush1.msra.mxu0 0.0
    %212 = vmatprep.subr.mxu0 0.0
    %213 = vmatpush1.msra.mxu0 0.0
    %214 = vmatprep.subr.mxu0 0.0
    %215 = vmatpush1.msra.mxu0 0.0
    %216 = vmatprep.subr.mxu0 0.0
    %217 = vmatpush1.msra.mxu0 0.0
    %218 = vmatprep.subr.mxu0 0.0
    %219 = vmatpush1.msra.mxu0 0.0
    %220 = vmatprep.mubr.f32.mxu0 0.0
    %221 = vmatmul.mubr.f32.gmra.mrb[0].mxu0 %v132
    %v222 = vpop.f32.mrb[0].mxu0
    %v223 = vadd.f32 %v154, %v222
    %v224 = vpop.f32.mrb[0].mxu0
    %225 = vdwg.mxu0
    %v226 = vmax.f32 %v223, 0.0
    %v227 = vld [vmem:[%s7] sm:$0xff]
    %v228 = vld [vmem:[%s7 + $0x8] sm:$0xff]
    %v229 = vld [vmem:[%s7 + $0x10] sm:$0xff]
    %v230 = vld [vmem:[%s7 + $0x18] sm:$0xff]
    %v231 = vld [vmem:[%s7 + $0x20] sm:$0xff]
    %v232 = vld [vmem:[%s7 + $0x28] sm:$0xff]
    %v233 = vld [vmem:[%s7 + $0x30] sm:$0xff]
    %v234 = vld [vmem:[%s7 + $0x38] sm:$0xff]
    %v235 = vld [vmem:[%s7 + $0x40] sm:$0xff]
    %v236 = vld [vmem:[%s7 + $0x48] sm:$0xff]
    %v237 = vld [vmem:[%s7 + $0x50] sm:$0xff]
    %v238 = vld [vmem:[%s7 + $0x58] sm:$0xff]
    %v239 = vld [vmem:[%s7 + $0x60] sm:$0xff]
    %v240 = vld [vmem:[%s7 + $0x68] sm:$0xff]
    %v241 = vld [vmem:[%s7 + $0x70] sm:$0xff]
    %v242 = vld [vmem:[%s7 + $0x78] sm:$0xff]
    %v243 = vld [vmem:[%s8] sm:$0x1]
    %v245 = vlaneseq
    %v246 = vshrl.u32 %v245, 7
    %v247 = vsub.s32 0, %v246
    %v248 = vrot.slane %v243, %v247
    %250 = vmatprep.subr.mxu0 0.0
    %251 = vmatpush1.msra.mxu0 %v227
    %252 = vmatprep.subr.mxu0 0.0
    %253 = vmatpush1.msra.mxu0 %v228
    %254 = vmatprep.subr.mxu0 0.0
    %255 = vmatpush1.msra.mxu0 %v229
    %256 = vmatprep.subr.mxu0 0.0
    %257 = vmatpush1.msra.mxu0 %v230
    %258 = vmatprep.subr.mxu0 0.0
    %259 = vmatpush1.msra.mxu0 %v231
    %260 = vmatprep.subr.mxu0 0.0
    %261 = vmatpush1.msra.mxu0 %v232
    %262 = vmatprep.subr.mxu0 0.0
    %263 = vmatpush1.msra.mxu0 %v233
    %264 = vmatprep.subr.mxu0 0.0
    %265 = vmatpush1.msra.mxu0 %v234
    %266 = vmatprep.subr.mxu0 0.0
    %267 = vmatpush1.msra.mxu0 %v235
    %268 = vmatprep.subr.mxu0 0.0
    %269 = vmatpush1.msra.mxu0 %v236
    %270 = vmatprep.subr.mxu0 0.0
    %271 = vmatpush1.msra.mxu0 %v237
    %272 = vmatprep.subr.mxu0 0.0
    %273 = vmatpush1.msra.mxu0 %v238
    %274 = vmatprep.subr.mxu0 0.0
    %275 = vmatpush1.msra.mxu0 %v239
    %276 = vmatprep.subr.mxu0 0.0
    %277 = vmatpush1.msra.mxu0 %v240
    %278 = vmatprep.subr.mxu0 0.0
    %279 = vmatpush1.msra.mxu0 %v241
    %280 = vmatprep.subr.mxu0 0.0
    %281 = vmatpush1.msra.mxu0 %v242
    %282 = vmatprep.subr.mxu0 0.0
    %283 = vmatpush1.msra.mxu0 0.0
    %284 = vmatprep.subr.mxu0 0.0
    %285 = vmatpush1.msra.mxu0 0.0
    %286 = vmatprep.subr.mxu0 0.0
    %287 = vmatpush1.msra.mxu0 0.0
    %288 = vmatprep.subr.mxu0 0.0
    %289 = vmatpush1.msra.mxu0 0.0
    %290 = vmatprep.subr.mxu0 0.0
    %291 = vmatpush1.msra.mxu0 0.0
    %292 = vmatprep.subr.mxu0 0.0
    %293 = vmatpush1.msra.mxu0 0.0
    %294 = vmatprep.subr.mxu0 0.0
    %295 = vmatpush1.msra.mxu0 0.0
    %296 = vmatprep.subr.mxu0 0.0
    %297 = vmatpush1.msra.mxu0 0.0
    %298 = vmatprep.subr.mxu0 0.0
    %299 = vmatpush1.msra.mxu0 0.0
    %300 = vmatprep.subr.mxu0 0.0
    %301 = vmatpush1.msra.mxu0 0.0
    %302 = vmatprep.subr.mxu0 0.0
    %303 = vmatpush1.msra.mxu0 0.0
    %304 = vmatprep.subr.mxu0 0.0
    %305 = vmatpush1.msra.mxu0 0.0
    %306 = vmatprep.subr.mxu0 0.0
    %307 = vmatpush1.msra.mxu0 0.0
    %308 = vmatprep.subr.mxu0 0.0
    %309 = vmatpush1.msra.mxu0 0.0
    %310 = vmatprep.subr.mxu0 0.0
    %311 = vmatpush1.msra.mxu0 0.0
    %312 = vmatprep.subr.mxu0 0.0
    %313 = vmatpush1.msra.mxu0 0.0
    %314 = vmatprep.mubr.f32.mxu0 0.0
    %315 = vmatmul.mubr.f32.gmra.mrb[0].mxu0 %v226
    %v316 = vpop.f32.mrb[0].mxu0
    %v317 = vadd.f32 %v248, %v316
    %v318 = vpop.f32.mrb[0].mxu0
    %319 = vdwg.mxu0
    %320 = vst.msk [vmem:[#allocation2] sm:$0xff] %vm50, %v317
    // Predicated region
    $region38: #{tpu_custom_call.1} parent=1 // pred_check
      _
    $region39: #{tpu_custom_call.1} parent=1 // pred_check_branch
      %322 = sbr.rel (0) target = $region41
    $region40: #{tpu_custom_call.1} parent=1 // pred_region
      %s324 = ssub.s32 128, 128
      %325 = vsyncadd [#allocation3], %s324
      %s327 = sshll.u32 [#allocation2], 4
      %s328 = int_to_ptr.vmem [resolvable:$true] %s327
      %330 = dma.vmem_to_hbm [thread:$0]  %s328, 128, %s9, [#allocation3]
    $region41: #{tpu_custom_call.1} parent=1 // pred_fallthru
      _
    // Predicated region
    $region42: #{tpu_custom_call.1} parent=1 // pred_check
      _
    $region43: #{tpu_custom_call.1} parent=1 // pred_check_branch
      %332 = sbr.rel (0) target = $region45
    $region44: #{tpu_custom_call.1} parent=1 // pred_region
      %333 = dma.done [#allocation3], 128
    $region45: #{tpu_custom_call.1} parent=1 // pred_fallthru
      _
    %334 = vsyncpa [#allocation3], 1

</llo_original>
